<compile_context>
chip_gen: v7x
topology: tpu7x:2x2x1
jax: 0.10.0
libtpu: 0.0.40
codegen_flags: <defaults>
</compile_context>

<pallas_src>
import math

import jax
import jax.numpy as jnp
from jax.experimental import pallas as pl
from jax.experimental.pallas import tpu as pltpu

# ---------------- configuration (small, consistent with the module) --------
B = 2            # batch
L = 8            # opt.max_seq_len
D = 32           # opt.bert_dim (== config.hidden_size)
NUM_HEADS = 4    # config.num_attention_heads
HEAD_DIM = D // NUM_HEADS
P = 3            # opt.polarities_dim
SRD = 3          # opt.SRD
VOCAB = 50

D2 = 2 * D
OUT_LANES = 128  # lane-dense output store; wrapper slices [:, :P]
OUT_ROWS = 8     # sublane-padded output rows per example

# ---- packed weight-slab layout: (W_ROWS, 128) f32, one DMA descriptor ------
#   rows 0:64 , lanes  0:32  : W2   = [w2l ; w2g]      (fused concat-linear)
#   rows 0:32 , lanes 32:64  : G    head one-hot (cols >= NUM_HEADS zero)
#   rows 0:32 , lanes 64:96  : G.T
#   rows 0:32 , lanes 96:128 : WP   (BertPooler)
#   rows 32:64, lanes 32:128 : [WK | WV | WQ]          (fused KVQ projection)
#   rows 64:96, lanes 0:128  : WD   classifier weight, padded to 128 lanes
#   row  96              : [b2 | bk | bv | bq]
#   row  97              : [bp | 0 ...]
#   row  98              : bd padded to 128 lanes
R_W2 = 0
R_KVQ = D
R_WD = D2
R_B = 96
W_ROWS = 104


# ---------------------------- Pallas kernel --------------------------------
def mbert_alg_kernel(xm_ref, w_ref, out_ref):
    f32 = jnp.float32

    xm = xm_ref[...]                            # (2L, 2D): rows 0:L acts, L:2L mask
    # LCF masking-mul; x = [local * mask | global]       (L, 2D)
    x = xm[0:L, :] * xm[L:2 * L, :]

    # cat([local, global], -1) @ W2 + b2 as a single matmul            (L, D)
    h = (jnp.dot(x, w_ref[R_W2:R_W2 + D2, 0:D], preferred_element_type=f32)
         + w_ref[R_B:R_B + 1, 0:D])

    # fused K|V|Q projection: one (L,32)x(32,96) matmul                (L, 3D)
    kvq = (jnp.dot(h, w_ref[R_KVQ:R_KVQ + D, D:4 * D], preferred_element_type=f32)
           + w_ref[R_B:R_B + 1, D:4 * D])
    k = kvq[:, 0:D]
    v = kvq[:, D:2 * D]
    # Only the CLS row of the attention output is consumed (BertPooler), so
    # only the CLS query is needed: identical result, 1/L of the FLOPs.
    q_cls = kvq[0:1, 2 * D:3 * D]

    # Per-head scores without lane slicing/concat, via the head one-hot G:
    #   S[j, head] = sum_{d in head} q_cls[d] * k[j, d]  ==  (q_cls*k) @ G
    scale = 1.0 / math.sqrt(HEAD_DIM)
    s = jnp.dot(q_cls * k, w_ref[0:D, D:2 * D], preferred_element_type=f32) * scale
    s = s - jnp.max(s, axis=0, keepdims=True)          # softmax over the L keys
    e = jnp.exp(s)
    probs = e / jnp.sum(e, axis=0, keepdims=True)      # exact division

    # Expand per-head probs back to lanes (G.T) and contract against V over keys:
    #   ctx[d] = sum_j probs[j, head(d)] * v[j, d]
    pe = jnp.dot(probs, w_ref[0:D, 2 * D:3 * D], preferred_element_type=f32)  # (L, D)
    ctx = jnp.sum(pe * v, axis=0, keepdims=True)                              # (1, D)
    sa_cls = jnp.tanh(ctx)              # Mbert_impr_mech tanh
    # TODO(synk): training-mode dropout (RNG) not implemented; eval identity used.

    # BertPooler (dense on token 0 + tanh) and final classifier; WD/bd are
    # padded to 128 lanes so the output store is lane-dense.
    pooled = jnp.tanh(
        jnp.dot(sa_cls, w_ref[0:D, 3 * D:4 * D], preferred_element_type=f32)
        + w_ref[R_B + 1:R_B + 2, 0:D])                                        # (1, D)
    logits = (jnp.dot(pooled, w_ref[R_WD:R_WD + D, :], preferred_element_type=f32)
              + w_ref[R_B + 2:R_B + 3, :])                                    # (1, 128)
    out_ref[...] = jnp.broadcast_to(logits, (OUT_ROWS, OUT_LANES))


# ------------------------- host-side packing & wrapper ----------------------
def _head_onehot_padded():
    d = jnp.arange(D)[:, None]
    hh = jnp.arange(NUM_HEADS)[None, :]
    g = (d // HEAD_DIM == hh).astype(jnp.float32)            # (D, NUM_HEADS)
    return jnp.pad(g, ((0, 0), (0, D - NUM_HEADS)))          # (D, D)


def pack_params(p):
    g = _head_onehot_padded()
    slab = jnp.zeros((W_ROWS, 128), jnp.float32)
    slab = slab.at[0:D2, 0:D].set(jnp.concatenate([p["w2l"], p["w2g"]], axis=0))
    slab = slab.at[0:D, D:2 * D].set(g)
    slab = slab.at[0:D, 2 * D:3 * D].set(g.T)
    slab = slab.at[0:D, 3 * D:4 * D].set(p["wp"])
    slab = slab.at[R_KVQ:R_KVQ + D, D:4 * D].set(
        jnp.concatenate([p["wk"], p["wv"], p["wq"]], axis=1))
    slab = slab.at[R_WD:R_WD + D, 0:P].set(p["wd"])
    slab = slab.at[R_B, 0:D].set(p["b2"].reshape(-1))
    slab = slab.at[R_B, D:2 * D].set(p["bk"].reshape(-1))
    slab = slab.at[R_B, 2 * D:3 * D].set(p["bv"].reshape(-1))
    slab = slab.at[R_B, 3 * D:4 * D].set(p["bq"].reshape(-1))
    slab = slab.at[R_B + 1, 0:D].set(p["bp"].reshape(-1))
    slab = slab.at[R_B + 2, 0:P].set(p["bd"].reshape(-1))
    return slab.astype(jnp.float32)


def mbert_alg_pallas(bert_local_out, bert_global_out, mask, params):
    # One stacked activation slab per example: rows 0:L = [local | global],
    # rows L:2L = [mask | ones].  The LCF masking-mul stays inside the kernel,
    # and the concat+Linear(2D->D) becomes a single matmul.
    xcat = jnp.concatenate([bert_local_out, bert_global_out], axis=-1)   # (B, L, 2D)
    mext = jnp.concatenate([mask, jnp.ones_like(mask)], axis=-1)         # (B, L, 2D)
    xm = jnp.concatenate([xcat, mext], axis=1).astype(jnp.float32)       # (B, 2L, 2D)
    w_slab = pack_params(params)

    out_padded = pl.pallas_call(
        mbert_alg_kernel,
        out_shape=jax.ShapeDtypeStruct((B, OUT_ROWS, OUT_LANES), jnp.float32),
        grid=(B,),                                     # one example per grid step
        in_specs=[
            pl.BlockSpec((None, 2 * L, D2), lambda b: (b, 0, 0)),   # activations+mask
            pl.BlockSpec((W_ROWS, 128), lambda b: (0, 0)),          # one weight slab
        ],
        out_specs=pl.BlockSpec((None, OUT_ROWS, OUT_LANES), lambda b: (b, 0, 0)),
        compiler_params=pltpu.CompilerParams(
            dimension_semantics=("parallel",)),        # v7x: one example per TC
    )(xm, w_slab)
    return out_padded[:, 0, :P]


# ------------------------- plain-JAX glue -----------------------------------
def locfeat_mask(text_local_indices, aspect_indices):
    """Vectorized equivalent of MBERT_ALG.Mbert_locfeat_extract (CDM mask)."""
    texts = text_local_indices
    asps = aspect_indices
    asp_len = jnp.sum(asps != 0, axis=1) - 2
    match = texts == asps[:, 1][:, None]
    found = jnp.any(match, axis=1)                 # "try/except argwhere"
    asp_begin = jnp.argmax(match, axis=1)
    mask_begin = jnp.where(asp_begin >= SRD, asp_begin - SRD, 0)
    end = asp_begin + asp_len + SRD + 1
    pos = jnp.arange(L)
    keep = (pos[None, :] >= mask_begin[:, None]) & (pos[None, :] < end[:, None])
    keep = jnp.where(found[:, None], keep, True)   # no match -> all ones
    return jnp.broadcast_to(keep[:, :, None], (texts.shape[0], L, D)).astype(jnp.float32)


def bert_stub(word_emb, seg_emb, token_ids, segment_ids=None):
    # TODO(synk): the real BERT encoders are injected submodules (external checkpoints);
    # replaced here by a deterministic embedding stub producing [B, L, D] hidden states.
    h = word_emb[token_ids]
    if segment_ids is not None:
        h = h + seg_emb[segment_ids]
    return jnp.tanh(h)


def ref_forward(local, glob, mask, p):
    lm = local * mask
    h = jnp.einsum("bld,de->ble", lm, p["w2l"]) + jnp.einsum("bld,de->ble", glob, p["w2g"]) + p["b2"]
    q = jnp.einsum("bld,de->ble", h, p["wq"]) + p["bq"]
    k = jnp.einsum("bld,de->ble", h, p["wk"]) + p["bk"]
    v = jnp.einsum("bld,de->ble", h, p["wv"]) + p["bv"]
    qh = q.reshape(B, L, NUM_HEADS, HEAD_DIM).transpose(0, 2, 1, 3)
    kh = k.reshape(B, L, NUM_HEADS, HEAD_DIM).transpose(0, 2, 1, 3)
    vh = v.reshape(B, L, NUM_HEADS, HEAD_DIM).transpose(0, 2, 1, 3)
    s = jnp.einsum("bhqd,bhkd->bhqk", qh, kh) / math.sqrt(HEAD_DIM)
    pr = jax.nn.softmax(s, axis=-1)
    ctx = jnp.einsum("bhqk,bhkd->bhqd", pr, vh).transpose(0, 2, 1, 3).reshape(B, L, D)
    sa = jnp.tanh(ctx)
    pooled = jnp.tanh(sa[:, 0, :] @ p["wp"] + p["bp"])
    return pooled @ p["wd"] + p["bd"]


# ------------------------------- main ---------------------------------------
if __name__ == "__main__":
    key = jax.random.PRNGKey(0)
    ks = jax.random.split(key, 16)

    def w(k, shape, scale=0.05):
        return (scale * jax.random.normal(k, shape)).astype(jnp.float32)

    params = {
        "w2l": w(ks[0], (D, D)), "w2g": w(ks[1], (D, D)), "b2": w(ks[2], (1, D)),
        "wq": w(ks[3], (D, D)), "bq": w(ks[4], (1, D)),
        "wk": w(ks[5], (D, D)), "bk": w(ks[6], (1, D)),
        "wv": w(ks[7], (D, D)), "bv": w(ks[8], (1, D)),
        "wp": w(ks[9], (D, D)), "bp": w(ks[10], (1, D)),
        "wd": w(ks[11], (D, P)), "bd": w(ks[12], (1, P)),
    }
    word_emb = w(ks[13], (VOCAB, D), scale=0.1)
    seg_emb = w(ks[14], (2, D), scale=0.1)

    # token inputs (inputs[0..3] of MBERT_ALG.forward)
    kt = jax.random.split(ks[15], 3)
    text_bert_indices = jax.random.randint(kt[0], (B, L), 1, VOCAB, dtype=jnp.int32)
    bert_segments_ids = jnp.zeros((B, L), dtype=jnp.int32)
    text_local_indices = jax.random.randint(kt[1], (B, L), 1, VOCAB, dtype=jnp.int32)
    # aspect: [CLS] asp_tok [SEP] 0...   with asp_tok guaranteed to appear in text
    aspect_indices = jnp.zeros((B, L), dtype=jnp.int32)
    aspect_indices = aspect_indices.at[:, 0].set(2)                       # [CLS]
    aspect_indices = aspect_indices.at[:, 1].set(text_local_indices[:, 3])
    aspect_indices = aspect_indices.at[:, 2].set(text_local_indices[:, 4])
    aspect_indices = aspect_indices.at[:, 3].set(3)                       # [SEP]

    # external BERT encoders (stubbed), LCF mask
    bert_global_out = bert_stub(word_emb, seg_emb, text_bert_indices, bert_segments_ids)
    bert_local_out = bert_stub(word_emb, seg_emb, text_local_indices)
    mask = locfeat_mask(text_local_indices, aspect_indices)

    out = mbert_alg_pallas(bert_local_out, bert_global_out, mask, params)
    out = jax.block_until_ready(out)

    ref = ref_forward(bert_local_out, bert_global_out, mask, params)
    assert out.shape == (B, P)
    # exact softmax division -> tight tolerance restored
    assert jnp.allclose(out, ref, atol=1e-4, rtol=1e-4), (out, ref)

    print("KERNEL_OK")
</pallas_src>

<mosaic_0001>
module attributes {stable_mosaic.version = 11 : i64} {
  func.func @mbert_alg_kernel(%arg0: i32, %arg1: memref<1x16x64xf32, #tpu.memory_space<vmem>>, %arg2: memref<104x128xf32, #tpu.memory_space<vmem>>, %arg3: memref<1x8x128xf32, #tpu.memory_space<vmem>>) attributes {dimension_semantics = [#tpu.dimension_semantics<parallel>], iteration_bounds = array<i64: 2>, scalar_prefetch = 0 : i64, scratch_operands = 0 : i64, tpu.core_type = #tpu.core_type<tc>, window_params = [{transform_indices = @transform_0, window_bounds = array<i64: 1, 16, 64>}, {pipeline_mode = #tpu.pipeline_mode<synchronous>, transform_indices = @transform_1, window_bounds = array<i64: 104, 128>}, {transform_indices = @transform_2, window_bounds = array<i64: 1, 8, 128>}]} {
    %c0 = arith.constant 0 : index
    %c0_0 = arith.constant 0 : index
    %c0_1 = arith.constant 0 : index
    %0 = vector.load %arg1[%c0, %c0_0, %c0_1] : memref<1x16x64xf32, #tpu.memory_space<vmem>>, vector<1x16x64xf32>
    %1 = vector.shape_cast %0 : vector<1x16x64xf32> to vector<16x64xf32>
    %2 = vector.extract_strided_slice %1 {offsets = [0, 0], sizes = [8, 64], strides = [1, 1]} : vector<16x64xf32> to vector<8x64xf32>
    %3 = vector.extract_strided_slice %1 {offsets = [8, 0], sizes = [8, 64], strides = [1, 1]} : vector<16x64xf32> to vector<8x64xf32>
    %4 = arith.mulf %2, %3 : vector<8x64xf32>
    %c0_2 = arith.constant 0 : index
    %c0_3 = arith.constant 0 : index
    %5 = vector.load %arg2[%c0_2, %c0_3] : memref<104x128xf32, #tpu.memory_space<vmem>>, vector<64x32xf32>
    %cst = arith.constant dense<0.000000e+00> : vector<8x32xf32>
    %6 = tpu.matmul %4, %5, %cst {dimension_numbers = #tpu.dot_dimension_numbers<[1], [0], [0], [1], [0, 0, 1, 1], [], []>} : vector<8x64xf32>, vector<64x32xf32>, vector<8x32xf32> -> vector<8x32xf32>
    %c96 = arith.constant 96 : index
    %c0_4 = arith.constant 0 : index
    %7 = vector.load %arg2[%c96, %c0_4] : memref<104x128xf32, #tpu.memory_space<vmem>>, vector<1x32xf32>
    %8 = vector.broadcast %7 : vector<1x32xf32> to vector<8x32xf32>
    %9 = arith.addf %6, %8 : vector<8x32xf32>
    %c32 = arith.constant 32 : index
    %c32_5 = arith.constant 32 : index
    %10 = vector.load %arg2[%c32, %c32_5] : memref<104x128xf32, #tpu.memory_space<vmem>>, vector<32x96xf32>
    %cst_6 = arith.constant dense<0.000000e+00> : vector<8x96xf32>
    %11 = tpu.matmul %9, %10, %cst_6 {dimension_numbers = #tpu.dot_dimension_numbers<[1], [0], [0], [1], [0, 0, 1, 1], [], []>} : vector<8x32xf32>, vector<32x96xf32>, vector<8x96xf32> -> vector<8x96xf32>
    %c96_7 = arith.constant 96 : index
    %c32_8 = arith.constant 32 : index
    %12 = vector.load %arg2[%c96_7, %c32_8] : memref<104x128xf32, #tpu.memory_space<vmem>>, vector<1x96xf32>
    %13 = vector.broadcast %12 : vector<1x96xf32> to vector<8x96xf32>
    %14 = arith.addf %11, %13 : vector<8x96xf32>
    %15 = vector.extract_strided_slice %14 {offsets = [0, 0], sizes = [8, 32], strides = [1, 1]} : vector<8x96xf32> to vector<8x32xf32>
    %16 = vector.extract_strided_slice %14 {offsets = [0, 32], sizes = [8, 32], strides = [1, 1]} : vector<8x96xf32> to vector<8x32xf32>
    %17 = vector.extract_strided_slice %14 {offsets = [0, 64], sizes = [1, 32], strides = [1, 1]} : vector<8x96xf32> to vector<1x32xf32>
    %18 = vector.broadcast %17 : vector<1x32xf32> to vector<8x32xf32>
    %19 = arith.mulf %18, %15 : vector<8x32xf32>
    %c0_9 = arith.constant 0 : index
    %c32_10 = arith.constant 32 : index
    %20 = vector.load %arg2[%c0_9, %c32_10] : memref<104x128xf32, #tpu.memory_space<vmem>>, vector<32x32xf32>
    %cst_11 = arith.constant dense<0.000000e+00> : vector<8x32xf32>
    %21 = tpu.matmul %19, %20, %cst_11 {dimension_numbers = #tpu.dot_dimension_numbers<[1], [0], [0], [1], [0, 0, 1, 1], [], []>} : vector<8x32xf32>, vector<32x32xf32>, vector<8x32xf32> -> vector<8x32xf32>
    %cst_12 = arith.constant 0.353553385 : f32
    %22 = vector.broadcast %cst_12 : f32 to vector<8x32xf32>
    %23 = arith.mulf %21, %22 : vector<8x32xf32>
    %cst_13 = arith.constant dense<0xFF800000> : vector<32xf32>
    %24 = vector.multi_reduction <maximumf>, %23, %cst_13 [0] : vector<8x32xf32> to vector<32xf32>
    %25 = vector.shape_cast %24 : vector<32xf32> to vector<1x32xf32>
    %26 = vector.broadcast %25 : vector<1x32xf32> to vector<8x32xf32>
    %27 = arith.subf %23, %26 : vector<8x32xf32>
    %28 = math.exp %27 : vector<8x32xf32>
    %cst_14 = arith.constant dense<0.000000e+00> : vector<32xf32>
    %29 = vector.multi_reduction <add>, %28, %cst_14 [0] : vector<8x32xf32> to vector<32xf32>
    %30 = vector.shape_cast %29 : vector<32xf32> to vector<1x32xf32>
    %31 = vector.broadcast %30 : vector<1x32xf32> to vector<8x32xf32>
    %32 = arith.divf %28, %31 : vector<8x32xf32>
    %c0_15 = arith.constant 0 : index
    %c64 = arith.constant 64 : index
    %33 = vector.load %arg2[%c0_15, %c64] : memref<104x128xf32, #tpu.memory_space<vmem>>, vector<32x32xf32>
    %cst_16 = arith.constant dense<0.000000e+00> : vector<8x32xf32>
    %34 = tpu.matmul %32, %33, %cst_16 {dimension_numbers = #tpu.dot_dimension_numbers<[1], [0], [0], [1], [0, 0, 1, 1], [], []>} : vector<8x32xf32>, vector<32x32xf32>, vector<8x32xf32> -> vector<8x32xf32>
    %35 = arith.mulf %34, %16 : vector<8x32xf32>
    %cst_17 = arith.constant dense<0.000000e+00> : vector<32xf32>
    %36 = vector.multi_reduction <add>, %35, %cst_17 [0] : vector<8x32xf32> to vector<32xf32>
    %37 = vector.shape_cast %36 : vector<32xf32> to vector<1x32xf32>
    %38 = math.tanh %37 : vector<1x32xf32>
    %c0_18 = arith.constant 0 : index
    %c96_19 = arith.constant 96 : index
    %39 = vector.load %arg2[%c0_18, %c96_19] : memref<104x128xf32, #tpu.memory_space<vmem>>, vector<32x32xf32>
    %cst_20 = arith.constant dense<0.000000e+00> : vector<1x32xf32>
    %40 = tpu.matmul %38, %39, %cst_20 {dimension_numbers = #tpu.dot_dimension_numbers<[1], [0], [0], [1], [0, 0, 1, 1], [], []>} : vector<1x32xf32>, vector<32x32xf32>, vector<1x32xf32> -> vector<1x32xf32>
    %c97 = arith.constant 97 : index
    %c0_21 = arith.constant 0 : index
    %41 = vector.load %arg2[%c97, %c0_21] : memref<104x128xf32, #tpu.memory_space<vmem>>, vector<1x32xf32>
    %42 = arith.addf %40, %41 : vector<1x32xf32>
    %43 = math.tanh %42 : vector<1x32xf32>
    %c64_22 = arith.constant 64 : index
    %c0_23 = arith.constant 0 : index
    %44 = vector.load %arg2[%c64_22, %c0_23] : memref<104x128xf32, #tpu.memory_space<vmem>>, vector<32x128xf32>
    %cst_24 = arith.constant dense<0.000000e+00> : vector<1x128xf32>
    %45 = tpu.matmul %43, %44, %cst_24 {dimension_numbers = #tpu.dot_dimension_numbers<[1], [0], [0], [1], [0, 0, 1, 1], [], []>} : vector<1x32xf32>, vector<32x128xf32>, vector<1x128xf32> -> vector<1x128xf32>
    %c98 = arith.constant 98 : index
    %c0_25 = arith.constant 0 : index
    %46 = vector.load %arg2[%c98, %c0_25] : memref<104x128xf32, #tpu.memory_space<vmem>>, vector<1x128xf32>
    %47 = arith.addf %45, %46 : vector<1x128xf32>
    %48 = vector.shape_cast %47 : vector<1x128xf32> to vector<1x128xf32>
    %49 = vector.broadcast %48 : vector<1x128xf32> to vector<8x128xf32>
    %c0_26 = arith.constant 0 : index
    %c0_27 = arith.constant 0 : index
    %c0_28 = arith.constant 0 : index
    %50 = vector.load %arg3[%c0_26, %c0_27, %c0_28] : memref<1x8x128xf32, #tpu.memory_space<vmem>>, vector<1x8x128xf32>
    %51 = vector.shape_cast %50 : vector<1x8x128xf32> to vector<8x128xf32>
    %52 = vector.shape_cast %49 : vector<8x128xf32> to vector<1x8x128xf32>
    tpu.vector_store %arg3[%c0_26, %c0_27, %c0_28], %52 {strides = array<i32>} : memref<1x8x128xf32, #tpu.memory_space<vmem>>, vector<1x8x128xf32>,
    return
  }
  func.func @transform_0(%arg0: i32) -> (i32, i32, i32) {
    %c0_i32 = arith.constant 0 : i32
    %c0_i32_0 = arith.constant 0 : i32
    %c0_i32_1 = arith.constant 0 : i32
    return %arg0, %c0_i32, %c0_i32_0 : i32, i32, i32
  }
  func.func @transform_1(%arg0: i32) -> (i32, i32) {
    %c0_i32 = arith.constant 0 : i32
    %c0_i32_0 = arith.constant 0 : i32
    %c0_i32_1 = arith.constant 0 : i32
    return %c0_i32, %c0_i32_0 : i32, i32
  }
  func.func @transform_2(%arg0: i32) -> (i32, i32, i32) {
    %c0_i32 = arith.constant 0 : i32
    %c0_i32_0 = arith.constant 0 : i32
    %c0_i32_1 = arith.constant 0 : i32
    return %arg0, %c0_i32, %c0_i32_0 : i32, i32, i32
  }
}

</mosaic_0001>

<llo_original>
// kernel: tpu_custom_call.1
$region0: #{tpu_custom_call.1}
  #allocation0 [shape = 'u32[]', space=smem, size = 0x4, offset = 0x4, fixed_abs, tag = 'smem constant byte address 0x4 - core index']
  #allocation1 [shape = 'u32[144,128]{1,0:T(1,128)}', space=vmem, size = 0x12000, scoped, tag = 'internal scratch']
  %s0 = inlined_call_operand.hbm [shape: f32[2,16,64], index: 0, kind: input, shape index: {}]
  %s1 = inlined_call_operand.hbm [shape: f32[104,128], index: 1, kind: input, shape index: {}]
  %s2 = inlined_call_operand.hbm [shape: f32[2,8,128], index: 2, kind: output, shape index: {}]
  %s3 = sld [smem:[#allocation0]]
  $region49: #{tpu_custom_call.1} parent=0
    _
  %s5 = ssub.s32 1, %s3
  %s6 = scalar_select 0, %s5, %s3
  $region1: #{tpu_custom_call.1} parent=0
    #allocation2 [shape = 'u8[16384]{0}', space=vmem, size = 0x4000, scoped, tag = 'input window, operand 0']
    #allocation3 [shape = 's32[2]{0}', space=sflag, size = 0x8, scoped, tag = 'scoped memory for tpu_custom_call.1']
    #allocation4 [shape = 's32[2]{0}', space=sflag, size = 0x8, scoped, tag = 'scoped memory for tpu_custom_call.1']
    #allocation5 [shape = 'u8[53248]{0}', space=vmem, size = 0xd000, scoped, tag = 'input window, operand 1, single buffered']
    #allocation6 [shape = 's32[1]{0}', space=sflag, size = 0x4, scoped, tag = 'scoped memory for tpu_custom_call.1']
    #allocation7 [shape = 'u8[8192]{0}', space=vmem, size = 0x2000, scoped, tag = 'output window, operand 0']
    %7 = vsyncpa [#allocation3], 0
    %s8 = scalar_lea.sflag [#allocation3], 1
    %9 = vsyncpa %s8, 0
    %10 = vsyncpa [#allocation6], 0
    %11 = vsyncpa [#allocation4], 0
    %s12 = scalar_lea.sflag [#allocation4], 1
    %13 = vsyncpa %s12, 0
    loop: start=0, step=1, limit=4
    $region2: #{tpu_custom_call.1} parent=1 // loop_pre_header
      _
    $region3: #{tpu_custom_call.1} parent=1 // loop_header
      %s15 = sphi 0, %s19
      %p16 = scmp.ge.s32.totalorder %s15, 4
      %s25 = sphi 0, %s27
      %s28 = sphi 0, %s25
      %s29 = sphi 0, %s28
      %s45 = sphi 0, %s29
      %s49 = sphi 0, %s49
      %s51 = sphi 0, %s49
      %s52 = sphi 0, %s51
      %s66 = sphi 0, %s52
      %s72 = sphi 0, %s74
      %s75 = sphi 0, %s72
      %s76 = sphi 0, %s75
      %s92 = sphi 0, %s76
    $region4: #{tpu_custom_call.1} parent=1 // loop_header_branch
      %18 = sbr.rel (%p16) target = $region8
    $region5: #{tpu_custom_call.1} parent=1 // loop_body
      %s20 = ssub.s32 %s15, 1
      %s21 = ssub.s32 %s15, 2
      %s22 = sadd.s32 %s15, 1
      %s23 = ssub.s32 %s15, %s22
      %p24 = scmp.eq.s32.totalorder %s23, 0
      %s26 = sadd.s32 %s25, 1
      %s27 = scalar_select %p24, %s25, %s26
      %p30 = pneg %p24
      %p31 = scmp.eq.s32.totalorder %s15, 1
      %p32 = por %p30, %p31
      %p33 = scmp.ne.s32.totalorder %s25, %s28
      %p34 = scmp.eq.s32.totalorder %s15, 0
      %p35 = por %p33, %p34
      %p36 = scmp.ne.s32.totalorder %s25, %s28
      %p37 = scmp.eq.s32.totalorder %s20, 1
      %p38 = por %p36, %p37
      %p39 = scmp.ne.s32.totalorder %s28, %s29
      %p40 = scmp.eq.s32.totalorder %s20, 0
      %p41 = por %p39, %p40
      %p42 = scmp.ne.s32.totalorder %s28, %s29
      %p43 = scmp.eq.s32.totalorder %s21, 1
      %p44 = por %p42, %p43
      %p46 = scmp.ne.s32.totalorder %s29, %s45
      %p47 = scmp.eq.s32.totalorder %s21, 0
      %p48 = por %p46, %p47
      %s50 = sadd.s32 %s49, 1
      %p53 = scmp.eq.s32.totalorder %s15, 1
      %p54 = scmp.ne.s32.totalorder %s49, %s51
      %p55 = scmp.eq.s32.totalorder %s15, 0
      %p56 = por %p54, %p55
      %p57 = scmp.ne.s32.totalorder %s49, %s51
      %p58 = scmp.eq.s32.totalorder %s20, 1
      %p59 = por %p57, %p58
      %p60 = scmp.ne.s32.totalorder %s51, %s52
      %p61 = scmp.eq.s32.totalorder %s20, 0
      %p62 = por %p60, %p61
      %p63 = scmp.ne.s32.totalorder %s51, %s52
      %p64 = scmp.eq.s32.totalorder %s21, 1
      %p65 = por %p63, %p64
      %p67 = scmp.ne.s32.totalorder %s52, %s66
      %p68 = scmp.eq.s32.totalorder %s21, 0
      %p69 = por %p67, %p68
      %s70 = ssub.s32 %s15, %s22
      %p71 = scmp.eq.s32.totalorder %s70, 0
      %s73 = sadd.s32 %s72, 1
      %s74 = scalar_select %p71, %s72, %s73
      %p77 = pneg %p71
      %p78 = scmp.eq.s32.totalorder %s15, 1
      %p79 = por %p77, %p78
      %p80 = scmp.ne.s32.totalorder %s72, %s75
      %p81 = scmp.eq.s32.totalorder %s15, 0
      %p82 = por %p80, %p81
      %p83 = scmp.ne.s32.totalorder %s72, %s75
      %p84 = scmp.eq.s32.totalorder %s20, 1
      %p85 = por %p83, %p84
      %p86 = scmp.ne.s32.totalorder %s75, %s76
      %p87 = scmp.eq.s32.totalorder %s20, 0
      %p88 = por %p86, %p87
      %p89 = scmp.ne.s32.totalorder %s75, %s76
      %p90 = scmp.eq.s32.totalorder %s21, 1
      %p91 = por %p89, %p90
      %p93 = scmp.ne.s32.totalorder %s76, %s92
      %p94 = scmp.eq.s32.totalorder %s21, 0
      %p95 = por %p93, %p94
      %p96 = scmp.le.s32.totalorder 1, %s15
      %p97 = scmp.lt.s32.totalorder %s15, 3
      %p98 = pnand %p96, %p97
      %p99 = pneg %p98
      // Predicated region
      $region9: #{tpu_custom_call.1} parent=5 // pred_check
        _
      $region10: #{tpu_custom_call.1} parent=5 // pred_check_branch
        %101 = sbr.rel (%p98) target = $region12
      $region11: #{tpu_custom_call.1} parent=5 // pred_region
        %s102 = ssub.s32 %s15, 1
        // Predicated region
        $region13: #{tpu_custom_call.1} parent=11 // pred_check
          %p103 = pneg %p62
        $region14: #{tpu_custom_call.1} parent=11 // pred_check_branch
          %105 = sbr.rel (%p103) target = $region16
        $region15: #{tpu_custom_call.1} parent=11 // pred_region
          %s107 = ssub.s32 1664, 1664
          %108 = vsyncadd [#allocation6], %s107
          %s109 = sshll.u32 [#allocation5], 4
          %s110 = int_to_ptr.vmem [resolvable:$true] %s109
          %115 = dma.hbm_to_vmem [thread:$0]  %s1, 1664, %s110, [#allocation6], 128, 128, 8
        $region16: #{tpu_custom_call.1} parent=11 // pred_fallthru
          _
      $region12: #{tpu_custom_call.1} parent=5 // pred_fallthru
        _
      %p116 = scmp.lt.s32.totalorder %s15, 2
      // Predicated region
      $region17: #{tpu_custom_call.1} parent=5 // pred_check
        %p117 = pneg %p116
      $region18: #{tpu_custom_call.1} parent=5 // pred_check_branch
        %119 = sbr.rel (%p117) target = $region20
      $region19: #{tpu_custom_call.1} parent=5 // pred_region
        // Predicated region
        $region21: #{tpu_custom_call.1} parent=19 // pred_check
          %p120 = pneg %p35
        $region22: #{tpu_custom_call.1} parent=19 // pred_check_branch
          %122 = sbr.rel (%p120) target = $region24
        $region23: #{tpu_custom_call.1} parent=19 // pred_region
          %s123 = sand.u32 %s25, 1
          %s124 = scalar_lea.sflag [#allocation3], %s123
          %s125 = sand.u32 %s25, 1
          %s126 = smul.addr %s125, 16
          %s127 = scalar_lea.vmem [#allocation2], %s126
          %s129 = ssub.s32 256, 256
          %130 = vsyncadd %s124, %s129
          %s131 = smul.addr %s15, 2
          %s132 = smul.addr %s131, 128
          %s133 = scalar_lea.hbm %s0, %s132
          %s134 = sshll.u32 %s127, 4
          %s135 = int_to_ptr.vmem [resolvable:$true] %s134
          %140 = dma.hbm_to_vmem [thread:$0]  %s133, 256, %s135, %s124, 128, 128, 8
        $region24: #{tpu_custom_call.1} parent=19 // pred_fallthru
          _
      $region20: #{tpu_custom_call.1} parent=5 // pred_fallthru
        _
      %p141 = scmp.le.s32.totalorder 1, %s15
      %p142 = scmp.lt.s32.totalorder %s15, 3
      %p143 = pnand %p141, %p142
      %p144 = pneg %p143
      // Predicated region
      $region25: #{tpu_custom_call.1} parent=5 // pred_check
        _
      $region26: #{tpu_custom_call.1} parent=5 // pred_check_branch
        %146 = sbr.rel (%p143) target = $region28
      $region27: #{tpu_custom_call.1} parent=5 // pred_region
        %s147 = ssub.s32 %s15, 1
        %s148 = sand.u32 %s28, 1
        %s149 = scalar_lea.sflag [#allocation3], %s148
        %s150 = sand.u32 %s28, 1
        %s151 = smul.addr %s150, 16
        %s152 = scalar_lea.vmem [#allocation2], %s151
        // Predicated region
        $region29: #{tpu_custom_call.1} parent=27 // pred_check
          %p153 = pneg %p41
        $region30: #{tpu_custom_call.1} parent=27 // pred_check_branch
          %155 = sbr.rel (%p153) target = $region32
        $region31: #{tpu_custom_call.1} parent=27 // pred_region
          %156 = dma.done %s149, 256
        $region32: #{tpu_custom_call.1} parent=27 // pred_fallthru
          _
        // Predicated region
        $region33: #{tpu_custom_call.1} parent=27 // pred_check
          %p157 = pneg %p62
        $region34: #{tpu_custom_call.1} parent=27 // pred_check_branch
          %159 = sbr.rel (%p157) target = $region36
        $region35: #{tpu_custom_call.1} parent=27 // pred_region
          %160 = dma.done [#allocation6], 1664
        $region36: #{tpu_custom_call.1} parent=27 // pred_fallthru
          _
        %s161 = sand.u32 %s28, 1
        %s162 = scalar_lea.sflag [#allocation3], %s161
        %s163 = sand.u32 %s28, 1
        %s164 = smul.addr %s163, 16
        %s165 = scalar_lea.vmem [#allocation2], %s164
        %p166 = pneg %p41
        %p167 = pneg %p38
        %p168 = pneg %p62
        %p169 = pneg %p59
        %p170 = pneg %p88
        %p171 = pneg %p85
        %s172 = sand.u32 %s75, 1
        %s173 = scalar_lea.sflag [#allocation4], %s172
        %s174 = sand.u32 %s75, 1
        %s175 = smul.addr %s174, 8
        %s176 = scalar_lea.vmem [#allocation7], %s175
        %v177 = vld [vmem:[%s152] sm:$0xff]
        %v178 = vld [vmem:[%s152 + $0x8] sm:$0xff]
        %v179 = vmul.f32 %v177, %v178
        %v180 = vld [vmem:[#allocation5] sm:$0xff]
        %v181 = vld [vmem:[#allocation5 + $0x8] sm:$0xff]
        %v182 = vld [vmem:[#allocation5 + $0x10] sm:$0xff]
        %v183 = vld [vmem:[#allocation5 + $0x18] sm:$0xff]
        %v184 = vld [vmem:[#allocation5 + $0x20] sm:$0xff]
        %v185 = vld [vmem:[#allocation5 + $0x28] sm:$0xff]
        %v186 = vld [vmem:[#allocation5 + $0x30] sm:$0xff]
        %v187 = vld [vmem:[#allocation5 + $0x38] sm:$0xff]
        %v188 = vld [vmem:[#allocation5 + $0x60] sm:$0x1]
        %v189 = vlaneseq
        %v190 = vshrl.u32 %v189, 7
        %v191 = vsub.s32 0, %v190
        %v192 = vrot.slane %v188, %v191
        %vm193 = vcmask 523264
        %v195 = vsel %vm193, %v179, 0
        %197 = vmatprep.subr.mxu0 0.0
        %198 = vmatpush1.msra.mxu0 %v180
        %199 = vmatprep.subr.mxu0 0.0
        %200 = vmatpush1.msra.mxu0 %v181
        %201 = vmatprep.subr.mxu0 0.0
        %202 = vmatpush1.msra.mxu0 %v182
        %203 = vmatprep.subr.mxu0 0.0
        %204 = vmatpush1.msra.mxu0 %v183
        %205 = vmatprep.subr.mxu0 0.0
        %206 = vmatpush1.msra.mxu0 %v184
        %207 = vmatprep.subr.mxu0 0.0
        %208 = vmatpush1.msra.mxu0 %v185
        %209 = vmatprep.subr.mxu0 0.0
        %210 = vmatpush1.msra.mxu0 %v186
        %211 = vmatprep.subr.mxu0 0.0
        %212 = vmatpush1.msra.mxu0 %v187
        %213 = vmatprep.subr.mxu0 0.0
        %214 = vmatpush1.msra.mxu0 0.0
        %215 = vmatprep.subr.mxu0 0.0
        %216 = vmatpush1.msra.mxu0 0.0
        %217 = vmatprep.subr.mxu0 0.0
        %218 = vmatpush1.msra.mxu0 0.0
        %219 = vmatprep.subr.mxu0 0.0
        %220 = vmatpush1.msra.mxu0 0.0
        %221 = vmatprep.subr.mxu0 0.0
        %222 = vmatpush1.msra.mxu0 0.0
        %223 = vmatprep.subr.mxu0 0.0
        %224 = vmatpush1.msra.mxu0 0.0
        %225 = vmatprep.subr.mxu0 0.0
        %226 = vmatpush1.msra.mxu0 0.0
        %227 = vmatprep.subr.mxu0 0.0
        %228 = vmatpush1.msra.mxu0 0.0
        %229 = vmatprep.subr.mxu0 0.0
        %230 = vmatpush1.msra.mxu0 0.0
        %231 = vmatprep.subr.mxu0 0.0
        %232 = vmatpush1.msra.mxu0 0.0
        %233 = vmatprep.subr.mxu0 0.0
        %234 = vmatpush1.msra.mxu0 0.0
        %235 = vmatprep.subr.mxu0 0.0
        %236 = vmatpush1.msra.mxu0 0.0
        %237 = vmatprep.subr.mxu0 0.0
        %238 = vmatpush1.msra.mxu0 0.0
        %239 = vmatprep.subr.mxu0 0.0
        %240 = vmatpush1.msra.mxu0 0.0
        %241 = vmatprep.subr.mxu0 0.0
        %242 = vmatpush1.msra.mxu0 0.0
        %243 = vmatprep.subr.mxu0 0.0
        %244 = vmatpush1.msra.mxu0 0.0
        %245 = vmatprep.subr.mxu0 0.0
        %246 = vmatpush1.msra.mxu0 0.0
        %247 = vmatprep.subr.mxu0 0.0
        %248 = vmatpush1.msra.mxu0 0.0
        %249 = vmatprep.subr.mxu0 0.0
        %250 = vmatpush1.msra.mxu0 0.0
        %251 = vmatprep.subr.mxu0 0.0
        %252 = vmatpush1.msra.mxu0 0.0
        %253 = vmatprep.subr.mxu0 0.0
        %254 = vmatpush1.msra.mxu0 0.0
        %255 = vmatprep.subr.mxu0 0.0
        %256 = vmatpush1.msra.mxu0 0.0
        %257 = vmatprep.subr.mxu0 0.0
        %258 = vmatpush1.msra.mxu0 0.0
        %259 = vmatprep.subr.mxu0 0.0
        %260 = vmatpush1.msra.mxu0 0.0
        %261 = vmatprep.mubr.f32.mxu0 0.0
        %262 = vmatmul.mubr.f32.gmra.mrb[0].mxu0 %v195
        %v263 = vpop.f32.mrb[0].mxu0
        %v264 = vadd.f32 %v192, %v263
        %v265 = vpop.f32.mrb[0].mxu0
        %266 = vdwg.mxu0
        %271 = vrot.lane.b32.xlu0 %v184, 96
        %v272 = vpop.permute.xlu0 %271
        %273 = vrot.lane.b32.xlu0 %v185, 96
        %v274 = vpop.permute.xlu0 %273
        %275 = vrot.lane.b32.xlu0 %v186, 96
        %v276 = vpop.permute.xlu0 %275
        %277 = vrot.lane.b32.xlu0 %v187, 96
        %v278 = vpop.permute.xlu0 %277
        %284 = vrot.lane.b32.xlu0 %v192, 96
        %v285 = vpop.permute.xlu0 %284
        %vm287 = vcmask 261120
        %v289 = vsel %vm287, %v264, 0
        %291 = vmatprep.subr.mxu0 0.0
        %292 = vmatpush1.msra.mxu0 %v272
        %293 = vmatprep.subr.mxu0 0.0
        %294 = vmatpush1.msra.mxu0 %v274
        %295 = vmatprep.subr.mxu0 0.0
        %296 = vmatpush1.msra.mxu0 %v276
        %297 = vmatprep.subr.mxu0 0.0
        %298 = vmatpush1.msra.mxu0 %v278
        %299 = vmatprep.subr.mxu0 0.0
        %300 = vmatpush1.msra.mxu0 0.0
        %301 = vmatprep.subr.mxu0 0.0
        %302 = vmatpush1.msra.mxu0 0.0
        %303 = vmatprep.subr.mxu0 0.0
        %304 = vmatpush1.msra.mxu0 0.0
        %305 = vmatprep.subr.mxu0 0.0
        %306 = vmatpush1.msra.mxu0 0.0
        %307 = vmatprep.subr.mxu0 0.0
        %308 = vmatpush1.msra.mxu0 0.0
        %309 = vmatprep.subr.mxu0 0.0
        %310 = vmatpush1.msra.mxu0 0.0
        %311 = vmatprep.subr.mxu0 0.0
        %312 = vmatpush1.msra.mxu0 0.0
        %313 = vmatprep.subr.mxu0 0.0
        %314 = vmatpush1.msra.mxu0 0.0
        %315 = vmatprep.subr.mxu0 0.0
        %316 = vmatpush1.msra.mxu0 0.0
        %317 = vmatprep.subr.mxu0 0.0
        %318 = vmatpush1.msra.mxu0 0.0
        %319 = vmatprep.subr.mxu0 0.0
        %320 = vmatpush1.msra.mxu0 0.0
        %321 = vmatprep.subr.mxu0 0.0
        %322 = vmatpush1.msra.mxu0 0.0
        %323 = vmatprep.subr.mxu0 0.0
        %324 = vmatpush1.msra.mxu0 0.0
        %325 = vmatprep.subr.mxu0 0.0
        %326 = vmatpush1.msra.mxu0 0.0
        %327 = vmatprep.subr.mxu0 0.0
        %328 = vmatpush1.msra.mxu0 0.0
        %329 = vmatprep.subr.mxu0 0.0
        %330 = vmatpush1.msra.mxu0 0.0
        %331 = vmatprep.subr.mxu0 0.0
        %332 = vmatpush1.msra.mxu0 0.0
        %333 = vmatprep.subr.mxu0 0.0
        %334 = vmatpush1.msra.mxu0 0.0
        %335 = vmatprep.subr.mxu0 0.0
        %336 = vmatpush1.msra.mxu0 0.0
        %337 = vmatprep.subr.mxu0 0.0
        %338 = vmatpush1.msra.mxu0 0.0
        %339 = vmatprep.subr.mxu0 0.0
        %340 = vmatpush1.msra.mxu0 0.0
        %341 = vmatprep.subr.mxu0 0.0
        %342 = vmatpush1.msra.mxu0 0.0
        %343 = vmatprep.subr.mxu0 0.0
        %344 = vmatpush1.msra.mxu0 0.0
        %345 = vmatprep.subr.mxu0 0.0
        %346 = vmatpush1.msra.mxu0 0.0
        %347 = vmatprep.subr.mxu0 0.0
        %348 = vmatpush1.msra.mxu0 0.0
        %349 = vmatprep.subr.mxu0 0.0
        %350 = vmatpush1.msra.mxu0 0.0
        %351 = vmatprep.subr.mxu0 0.0
        %352 = vmatpush1.msra.mxu0 0.0
        %353 = vmatprep.subr.mxu0 0.0
        %354 = vmatpush1.msra.mxu0 0.0
        %355 = vmatprep.mubr.f32.mxu0 0.0
        %356 = vmatmul.mubr.f32.gmra.mrb[0].mxu0 %v289
        %v357 = vpop.f32.mrb[0].mxu0
        %v358 = vadd.f32 %v285, %v357
        %v359 = vpop.f32.mrb[0].mxu0
        %360 = vdwg.mxu0
        %v361 = vlaneseq
        %v362 = vshrl.u32 %v361, 7
        %v363 = vsub.s32 0, %v362
        %v364 = vrot.slane %v358, %v363
        %366 = vrot.lane.b32.xlu0 %v358, 64
        %v367 = vpop.permute.xlu0 %366
        %v369 = vmul.f32 %v364, %v367
        %v370 = vld [vmem:[#allocation5] sm:$0xff]
        %v371 = vld [vmem:[#allocation5 + $0x8] sm:$0xff]
        %v372 = vld [vmem:[#allocation5 + $0x10] sm:$0xff]
        %v373 = vld [vmem:[#allocation5 + $0x18] sm:$0xff]
        %375 = vrot.lane.b32.xlu0 %v369, 64
        %v376 = vpop.permute.xlu0 %375
        %381 = vrot.lane.b32.xlu0 %v370, 96
        %v382 = vpop.permute.xlu0 %381
        %383 = vrot.lane.b32.xlu0 %v371, 96
        %v384 = vpop.permute.xlu0 %383
        %385 = vrot.lane.b32.xlu0 %v372, 96
        %v386 = vpop.permute.xlu0 %385
        %387 = vrot.lane.b32.xlu0 %v373, 96
        %v388 = vpop.permute.xlu0 %387
        %v393 = vsel %vm287, %v376, 0
        %395 = vmatprep.subr.mxu0 0.0
        %396 = vmatpush1.msra.mxu0 %v382
        %397 = vmatprep.subr.mxu0 0.0
        %398 = vmatpush1.msra.mxu0 %v384
        %399 = vmatprep.subr.mxu0 0.0
        %400 = vmatpush1.msra.mxu0 %v386
        %401 = vmatprep.subr.mxu0 0.0
        %402 = vmatpush1.msra.mxu0 %v388
        %403 = vmatprep.subr.mxu0 0.0
        %404 = vmatpush1.msra.mxu0 0.0
        %405 = vmatprep.subr.mxu0 0.0
        %406 = vmatpush1.msra.mxu0 0.0
        %407 = vmatprep.subr.mxu0 0.0
        %408 = vmatpush1.msra.mxu0 0.0
        %409 = vmatprep.subr.mxu0 0.0
        %410 = vmatpush1.msra.mxu0 0.0
        %411 = vmatprep.subr.mxu0 0.0
        %412 = vmatpush1.msra.mxu0 0.0
        %413 = vmatprep.subr.mxu0 0.0
        %414 = vmatpush1.msra.mxu0 0.0
        %415 = vmatprep.subr.mxu0 0.0
        %416 = vmatpush1.msra.mxu0 0.0
        %417 = vmatprep.subr.mxu0 0.0
        %418 = vmatpush1.msra.mxu0 0.0
        %419 = vmatprep.subr.mxu0 0.0
        %420 = vmatpush1.msra.mxu0 0.0
        %421 = vmatprep.subr.mxu0 0.0
        %422 = vmatpush1.msra.mxu0 0.0
        %423 = vmatprep.subr.mxu0 0.0
        %424 = vmatpush1.msra.mxu0 0.0
        %425 = vmatprep.subr.mxu0 0.0
        %426 = vmatpush1.msra.mxu0 0.0
        %427 = vmatprep.subr.mxu0 0.0
        %428 = vmatpush1.msra.mxu0 0.0
        %429 = vmatprep.subr.mxu0 0.0
        %430 = vmatpush1.msra.mxu0 0.0
        %431 = vmatprep.subr.mxu0 0.0
        %432 = vmatpush1.msra.mxu0 0.0
        %433 = vmatprep.subr.mxu0 0.0
        %434 = vmatpush1.msra.mxu0 0.0
        %435 = vmatprep.subr.mxu0 0.0
        %436 = vmatpush1.msra.mxu0 0.0
        %437 = vmatprep.subr.mxu0 0.0
        %438 = vmatpush1.msra.mxu0 0.0
        %439 = vmatprep.subr.mxu0 0.0
        %440 = vmatpush1.msra.mxu0 0.0
        %441 = vmatprep.subr.mxu0 0.0
        %442 = vmatpush1.msra.mxu0 0.0
        %443 = vmatprep.subr.mxu0 0.0
        %444 = vmatpush1.msra.mxu0 0.0
        %445 = vmatprep.subr.mxu0 0.0
        %446 = vmatpush1.msra.mxu0 0.0
        %447 = vmatprep.subr.mxu0 0.0
        %448 = vmatpush1.msra.mxu0 0.0
        %449 = vmatprep.subr.mxu0 0.0
        %450 = vmatpush1.msra.mxu0 0.0
        %451 = vmatprep.subr.mxu0 0.0
        %452 = vmatpush1.msra.mxu0 0.0
        %453 = vmatprep.subr.mxu0 0.0
        %454 = vmatpush1.msra.mxu0 0.0
        %455 = vmatprep.subr.mxu0 0.0
        %456 = vmatpush1.msra.mxu0 0.0
        %457 = vmatprep.subr.mxu0 0.0
        %458 = vmatpush1.msra.mxu0 0.0
        %459 = vmatprep.mubr.f32.mxu0 0.0
        %460 = vmatmul.mubr.f32.gmra.mrb[0].mxu0 %v393
        %v461 = vpop.f32.mrb[0].mxu0
        %v462 = vadd.f32 0.0, %v461
        %v463 = vpop.f32.mrb[0].mxu0
        %464 = vdwg.mxu0
        %v465 = vmul.f32 %v462, 0.35355338
        %v466 = vsel %vm287, %v465, -inf
        %v467 = vrot.slane %v466, 4
        %v468 = vmax.f32 %v466, %v467
        %v469 = vrot.slane %v468, 2
        %v470 = vmax.f32 %v468, %v469
        %v471 = vrot.slane %v470, 1
        %v472 = vmax.f32 %v470, %v471
        %v473 = vsub.f32 %v465, %v472
        %v474 = vmul.f32 %v473, 1.442695
        %v475 = vpow.pop %v474
        %v476 = vsel %vm287, %v475, 0.0
        %v477 = vrot.slane %v476, 4
        %v478 = vadd.f32 %v476, %v477
        %v479 = vrot.slane %v478, 2
        %v480 = vadd.f32 %v478, %v479
        %v481 = vrot.slane %v480, 1
        %v482 = vadd.f32 %v480, %v481
        %v483 = vrcp.pop %v482
        %v484 = vmul.f32 %v475, %v483
        %485 = vrot.lane.b32.xlu0 %v370, 64
        %v486 = vpop.permute.xlu0 %485
        %487 = vrot.lane.b32.xlu0 %v371, 64
        %v488 = vpop.permute.xlu0 %487
        %489 = vrot.lane.b32.xlu0 %v372, 64
        %v490 = vpop.permute.xlu0 %489
        %491 = vrot.lane.b32.xlu0 %v373, 64
        %v492 = vpop.permute.xlu0 %491
        %v498 = vsel %vm287, %v484, 0
        %500 = vmatprep.subr.mxu0 0.0
        %501 = vmatpush1.msra.mxu0 %v486
        %502 = vmatprep.subr.mxu0 0.0
        %503 = vmatpush1.msra.mxu0 %v488
        %504 = vmatprep.subr.mxu0 0.0
        %505 = vmatpush1.msra.mxu0 %v490
        %506 = vmatprep.subr.mxu0 0.0
        %507 = vmatpush1.msra.mxu0 %v492
        %508 = vmatprep.subr.mxu0 0.0
        %509 = vmatpush1.msra.mxu0 0.0
        %510 = vmatprep.subr.mxu0 0.0
        %511 = vmatpush1.msra.mxu0 0.0
        %512 = vmatprep.subr.mxu0 0.0
        %513 = vmatpush1.msra.mxu0 0.0
        %514 = vmatprep.subr.mxu0 0.0
        %515 = vmatpush1.msra.mxu0 0.0
        %516 = vmatprep.subr.mxu0 0.0
        %517 = vmatpush1.msra.mxu0 0.0
        %518 = vmatprep.subr.mxu0 0.0
        %519 = vmatpush1.msra.mxu0 0.0
        %520 = vmatprep.subr.mxu0 0.0
        %521 = vmatpush1.msra.mxu0 0.0
        %522 = vmatprep.subr.mxu0 0.0
        %523 = vmatpush1.msra.mxu0 0.0
        %524 = vmatprep.subr.mxu0 0.0
        %525 = vmatpush1.msra.mxu0 0.0
        %526 = vmatprep.subr.mxu0 0.0
        %527 = vmatpush1.msra.mxu0 0.0
        %528 = vmatprep.subr.mxu0 0.0
        %529 = vmatpush1.msra.mxu0 0.0
        %530 = vmatprep.subr.mxu0 0.0
        %531 = vmatpush1.msra.mxu0 0.0
        %532 = vmatprep.subr.mxu0 0.0
        %533 = vmatpush1.msra.mxu0 0.0
        %534 = vmatprep.subr.mxu0 0.0
        %535 = vmatpush1.msra.mxu0 0.0
        %536 = vmatprep.subr.mxu0 0.0
        %537 = vmatpush1.msra.mxu0 0.0
        %538 = vmatprep.subr.mxu0 0.0
        %539 = vmatpush1.msra.mxu0 0.0
        %540 = vmatprep.subr.mxu0 0.0
        %541 = vmatpush1.msra.mxu0 0.0
        %542 = vmatprep.subr.mxu0 0.0
        %543 = vmatpush1.msra.mxu0 0.0
        %544 = vmatprep.subr.mxu0 0.0
        %545 = vmatpush1.msra.mxu0 0.0
        %546 = vmatprep.subr.mxu0 0.0
        %547 = vmatpush1.msra.mxu0 0.0
        %548 = vmatprep.subr.mxu0 0.0
        %549 = vmatpush1.msra.mxu0 0.0
        %550 = vmatprep.subr.mxu0 0.0
        %551 = vmatpush1.msra.mxu0 0.0
        %552 = vmatprep.subr.mxu0 0.0
        %553 = vmatpush1.msra.mxu0 0.0
        %554 = vmatprep.subr.mxu0 0.0
        %555 = vmatpush1.msra.mxu0 0.0
        %556 = vmatprep.subr.mxu0 0.0
        %557 = vmatpush1.msra.mxu0 0.0
        %558 = vmatprep.subr.mxu0 0.0
        %559 = vmatpush1.msra.mxu0 0.0
        %560 = vmatprep.subr.mxu0 0.0
        %561 = vmatpush1.msra.mxu0 0.0
        %562 = vmatprep.subr.mxu0 0.0
        %563 = vmatpush1.msra.mxu0 0.0
        %564 = vmatprep.mubr.f32.mxu0 0.0
        %565 = vmatmul.mubr.f32.gmra.mrb[0].mxu0 %v498
        %v566 = vpop.f32.mrb[0].mxu0
        %v567 = vadd.f32 0.0, %v566
        %v568 = vpop.f32.mrb[0].mxu0
        %569 = vdwg.mxu0
        %570 = vrot.lane.b32.xlu0 %v358, 96
        %v571 = vpop.permute.xlu0 %570
        %v573 = vmul.f32 %v567, %v571
        %v574 = vsel %vm287, %v573, 0.0
        %v575 = vrot.slane %v574, 4
        %v576 = vadd.f32 %v574, %v575
        %v577 = vrot.slane %v576, 2
        %v578 = vadd.f32 %v576, %v577
        %v579 = vrot.slane %v578, 1
        %v580 = vadd.f32 %v578, %v579
        %v581 = vtanh.pop %v580
        %v582 = vld [vmem:[#allocation5 + $0x61] sm:$0x1]
        %583 = vrot.lane.b32.xlu0 %v370, 32
        %v584 = vpop.permute.xlu0 %583
        %585 = vrot.lane.b32.xlu0 %v371, 32
        %v586 = vpop.permute.xlu0 %585
        %587 = vrot.lane.b32.xlu0 %v372, 32
        %v588 = vpop.permute.xlu0 %587
        %589 = vrot.lane.b32.xlu0 %v373, 32
        %v590 = vpop.permute.xlu0 %589
        %v596 = vsel %vm287, %v581, 0
        %598 = vmatprep.subr.mxu0 0.0
        %599 = vmatpush1.msra.mxu0 %v584
        %600 = vmatprep.subr.mxu0 0.0
        %601 = vmatpush1.msra.mxu0 %v586
        %602 = vmatprep.subr.mxu0 0.0
        %603 = vmatpush1.msra.mxu0 %v588
        %604 = vmatprep.subr.mxu0 0.0
        %605 = vmatpush1.msra.mxu0 %v590
        %606 = vmatprep.subr.mxu0 0.0
        %607 = vmatpush1.msra.mxu0 0.0
        %608 = vmatprep.subr.mxu0 0.0
        %609 = vmatpush1.msra.mxu0 0.0
        %610 = vmatprep.subr.mxu0 0.0
        %611 = vmatpush1.msra.mxu0 0.0
        %612 = vmatprep.subr.mxu0 0.0
        %613 = vmatpush1.msra.mxu0 0.0
        %614 = vmatprep.subr.mxu0 0.0
        %615 = vmatpush1.msra.mxu0 0.0
        %616 = vmatprep.subr.mxu0 0.0
        %617 = vmatpush1.msra.mxu0 0.0
        %618 = vmatprep.subr.mxu0 0.0
        %619 = vmatpush1.msra.mxu0 0.0
        %620 = vmatprep.subr.mxu0 0.0
        %621 = vmatpush1.msra.mxu0 0.0
        %622 = vmatprep.subr.mxu0 0.0
        %623 = vmatpush1.msra.mxu0 0.0
        %624 = vmatprep.subr.mxu0 0.0
        %625 = vmatpush1.msra.mxu0 0.0
        %626 = vmatprep.subr.mxu0 0.0
        %627 = vmatpush1.msra.mxu0 0.0
        %628 = vmatprep.subr.mxu0 0.0
        %629 = vmatpush1.msra.mxu0 0.0
        %630 = vmatprep.subr.mxu0 0.0
        %631 = vmatpush1.msra.mxu0 0.0
        %632 = vmatprep.subr.mxu0 0.0
        %633 = vmatpush1.msra.mxu0 0.0
        %634 = vmatprep.subr.mxu0 0.0
        %635 = vmatpush1.msra.mxu0 0.0
        %636 = vmatprep.subr.mxu0 0.0
        %637 = vmatpush1.msra.mxu0 0.0
        %638 = vmatprep.subr.mxu0 0.0
        %639 = vmatpush1.msra.mxu0 0.0
        %640 = vmatprep.subr.mxu0 0.0
        %641 = vmatpush1.msra.mxu0 0.0
        %642 = vmatprep.subr.mxu0 0.0
        %643 = vmatpush1.msra.mxu0 0.0
        %644 = vmatprep.subr.mxu0 0.0
        %645 = vmatpush1.msra.mxu0 0.0
        %646 = vmatprep.subr.mxu0 0.0
        %647 = vmatpush1.msra.mxu0 0.0
        %648 = vmatprep.subr.mxu0 0.0
        %649 = vmatpush1.msra.mxu0 0.0
        %650 = vmatprep.subr.mxu0 0.0
        %651 = vmatpush1.msra.mxu0 0.0
        %652 = vmatprep.subr.mxu0 0.0
        %653 = vmatpush1.msra.mxu0 0.0
        %654 = vmatprep.subr.mxu0 0.0
        %655 = vmatpush1.msra.mxu0 0.0
        %656 = vmatprep.subr.mxu0 0.0
        %657 = vmatpush1.msra.mxu0 0.0
        %658 = vmatprep.subr.mxu0 0.0
        %659 = vmatpush1.msra.mxu0 0.0
        %660 = vmatprep.subr.mxu0 0.0
        %661 = vmatpush1.msra.mxu0 0.0
        %662 = vmatprep.mubr.f32.mxu0 0.0
        %663 = vmatmul.mubr.f32.gmra.mrb[0].mxu0 %v596
        %v664 = vpop.f32.mrb[0].mxu0
        %v665 = vadd.f32 %v582, %v664
        %v666 = vpop.f32.mrb[0].mxu0
        %667 = vdwg.mxu0
        %v668 = vtanh.pop %v665
        %v669 = vld [vmem:[#allocation5 + $0x40] sm:$0xff]
        %v670 = vld [vmem:[#allocation5 + $0x48] sm:$0xff]
        %v671 = vld [vmem:[#allocation5 + $0x50] sm:$0xff]
        %v672 = vld [vmem:[#allocation5 + $0x58] sm:$0xff]
        %v673 = vld [vmem:[#allocation5 + $0x62] sm:$0x1]
        %v675 = vsel %vm287, %v668, 0
        %677 = vmatprep.subr.mxu0 0.0
        %678 = vmatpush1.msra.mxu0 %v669
        %679 = vmatprep.subr.mxu0 0.0
        %680 = vmatpush1.msra.mxu0 %v670
        %681 = vmatprep.subr.mxu0 0.0
        %682 = vmatpush1.msra.mxu0 %v671
        %683 = vmatprep.subr.mxu0 0.0
        %684 = vmatpush1.msra.mxu0 %v672
        %685 = vmatprep.subr.mxu0 0.0
        %686 = vmatpush1.msra.mxu0 0.0
        %687 = vmatprep.subr.mxu0 0.0
        %688 = vmatpush1.msra.mxu0 0.0
        %689 = vmatprep.subr.mxu0 0.0
        %690 = vmatpush1.msra.mxu0 0.0
        %691 = vmatprep.subr.mxu0 0.0
        %692 = vmatpush1.msra.mxu0 0.0
        %693 = vmatprep.subr.mxu0 0.0
        %694 = vmatpush1.msra.mxu0 0.0
        %695 = vmatprep.subr.mxu0 0.0
        %696 = vmatpush1.msra.mxu0 0.0
        %697 = vmatprep.subr.mxu0 0.0
        %698 = vmatpush1.msra.mxu0 0.0
        %699 = vmatprep.subr.mxu0 0.0
        %700 = vmatpush1.msra.mxu0 0.0
        %701 = vmatprep.subr.mxu0 0.0
        %702 = vmatpush1.msra.mxu0 0.0
        %703 = vmatprep.subr.mxu0 0.0
        %704 = vmatpush1.msra.mxu0 0.0
        %705 = vmatprep.subr.mxu0 0.0
        %706 = vmatpush1.msra.mxu0 0.0
        %707 = vmatprep.subr.mxu0 0.0
        %708 = vmatpush1.msra.mxu0 0.0
        %709 = vmatprep.subr.mxu0 0.0
        %710 = vmatpush1.msra.mxu0 0.0
        %711 = vmatprep.subr.mxu0 0.0
        %712 = vmatpush1.msra.mxu0 0.0
        %713 = vmatprep.subr.mxu0 0.0
        %714 = vmatpush1.msra.mxu0 0.0
        %715 = vmatprep.subr.mxu0 0.0
        %716 = vmatpush1.msra.mxu0 0.0
        %717 = vmatprep.subr.mxu0 0.0
        %718 = vmatpush1.msra.mxu0 0.0
        %719 = vmatprep.subr.mxu0 0.0
        %720 = vmatpush1.msra.mxu0 0.0
        %721 = vmatprep.subr.mxu0 0.0
        %722 = vmatpush1.msra.mxu0 0.0
        %723 = vmatprep.subr.mxu0 0.0
        %724 = vmatpush1.msra.mxu0 0.0
        %725 = vmatprep.subr.mxu0 0.0
        %726 = vmatpush1.msra.mxu0 0.0
        %727 = vmatprep.subr.mxu0 0.0
        %728 = vmatpush1.msra.mxu0 0.0
        %729 = vmatprep.subr.mxu0 0.0
        %730 = vmatpush1.msra.mxu0 0.0
        %731 = vmatprep.subr.mxu0 0.0
        %732 = vmatpush1.msra.mxu0 0.0
        %733 = vmatprep.subr.mxu0 0.0
        %734 = vmatpush1.msra.mxu0 0.0
        %735 = vmatprep.subr.mxu0 0.0
        %736 = vmatpush1.msra.mxu0 0.0
        %737 = vmatprep.subr.mxu0 0.0
        %738 = vmatpush1.msra.mxu0 0.0
        %739 = vmatprep.subr.mxu0 0.0
        %740 = vmatpush1.msra.mxu0 0.0
        %741 = vmatprep.mubr.f32.mxu0 0.0
        %742 = vmatmul.mubr.f32.gmra.mrb[0].mxu0 %v675
        %v743 = vpop.f32.mrb[0].mxu0
        %v744 = vadd.f32 %v673, %v743
        %v745 = vpop.f32.mrb[0].mxu0
        %746 = vdwg.mxu0
        %v747 = vlaneseq
        %v748 = vshrl.u32 %v747, 7
        %v749 = vsub.s32 0, %v748
        %v750 = vrot.slane %v744, %v749
        %751 = vst [vmem:[%s176] sm:$0xff] %v750
        %s752 = sand.u32 %s75, 1
        %s753 = scalar_lea.sflag [#allocation4], %s752
        %s754 = sand.u32 %s75, 1
        %s755 = smul.addr %s754, 8
        %s756 = scalar_lea.vmem [#allocation7], %s755
        // Predicated region
        $region37: #{tpu_custom_call.1} parent=27 // pred_check
          %p757 = pneg %p85
        $region38: #{tpu_custom_call.1} parent=27 // pred_check_branch
          %759 = sbr.rel (%p757) target = $region40
        $region39: #{tpu_custom_call.1} parent=27 // pred_region
          %s761 = ssub.s32 128, 128
          %762 = vsyncadd %s753, %s761
          %s763 = smul.addr %s20, 128
          %s764 = scalar_lea.hbm %s2, %s763
          %s766 = sshll.u32 %s756, 4
          %s767 = int_to_ptr.vmem [resolvable:$true] %s766
          %769 = dma.vmem_to_hbm [thread:$0]  %s767, 128, %s764, %s753
        $region40: #{tpu_custom_call.1} parent=27 // pred_fallthru
          _
      $region28: #{tpu_custom_call.1} parent=5 // pred_fallthru
        _
      %p770 = scmp.le.s32.totalorder 2, %s15
      // Predicated region
      $region41: #{tpu_custom_call.1} parent=5 // pred_check
        %p771 = pneg %p770
      $region42: #{tpu_custom_call.1} parent=5 // pred_check_branch
        %773 = sbr.rel (%p771) target = $region44
      $region43: #{tpu_custom_call.1} parent=5 // pred_region
        %s774 = ssub.s32 %s15, 2
        // Predicated region
        $region45: #{tpu_custom_call.1} parent=43 // pred_check
          %p775 = pneg %p91
        $region46: #{tpu_custom_call.1} parent=43 // pred_check_branch
          %777 = sbr.rel (%p775) target = $region48
        $region47: #{tpu_custom_call.1} parent=43 // pred_region
          %s778 = sand.u32 %s76, 1
          %s779 = scalar_lea.sflag [#allocation4], %s778
          %s780 = sand.u32 %s76, 1
          %s781 = smul.addr %s780, 8
          %s782 = scalar_lea.vmem [#allocation7], %s781
          %783 = dma.done %s779, 128
        $region48: #{tpu_custom_call.1} parent=43 // pred_fallthru
          _
      $region44: #{tpu_custom_call.1} parent=5 // pred_fallthru
        _
    $region6: #{tpu_custom_call.1} parent=1 // loop_footer
      %s19 = sadd.s32 1, %s15
    $region7: #{tpu_custom_call.1} parent=1 // loop_footer_branch
      %14 = sbr.rel target = $region3
    $region8: #{tpu_custom_call.1} parent=1 // loop_exit
      _
    %784 = vsyncpa [#allocation3], 1
    %s785 = scalar_lea.sflag [#allocation3], 1
    %786 = vsyncpa %s785, 1
    %787 = vsyncpa [#allocation6], 1
    %788 = vsyncpa [#allocation4], 1
    %s789 = scalar_lea.sflag [#allocation4], 1
    %790 = vsyncpa %s789, 1

</llo_original>
